<compile_context>
chip_gen: v7x
topology: tpu7x:2x2x1
jax: 0.10.0
libtpu: 0.0.40
codegen_flags: <defaults>
</compile_context>

<pallas_src>
import jax
import jax.numpy as jnp
from jax.experimental import pallas as pl
from jax.experimental.pallas import tpu as pltpu


def _abs_pos_emb_kernel(q_ref, embt_ref, o_ref):
    # q_ref:    (TILE_M, D)      row tile of flattened q
    # embt_ref: (D, TILE_N)      column tile of the pre-transposed embedding
    # o_ref:    (TILE_M, TILE_N)
    o_ref[...] = jnp.dot(
        q_ref[...], embt_ref[...], preferred_element_type=jnp.float32
    ).astype(o_ref.dtype)


def _vmem_budget_and_limit():
    """Generation-aware VMEM sizing (128 MiB on v5e/v6e, 64 MiB/TC on v7x)."""
    try:
        cap = int(pltpu.get_tpu_info().vmem_capacity_bytes)
    except Exception:  # info unavailable -> assume the smallest (v7x per-TC)
        cap = 64 * 1024 * 1024
    if cap >= 96 * 1024 * 1024:        # v5e / v6e: 128 MiB physical
        return 64 * 1024 * 1024, 96 * 1024 * 1024
    # v7x: 64 MiB per TensorCore -> leave headroom for compiler scratch
    return 36 * 1024 * 1024, 52 * 1024 * 1024


def _choose_tiles(M, J, D, itemsize, vmem_budget):
    # J axis: single full-extent tile when small (exempt from the 128-multiple
    # rule, avoids writing padded lanes); otherwise lane-dense 128-multiples.
    tile_n = J if J <= 2048 else 2048
    # M axis: large row tiles (multiple of 128 -> full MXU passes); full extent
    # when M itself is small.
    tile_m = M if M <= 512 else 512

    def est(tm, tn):
        # Worst case: double-buffered q tile, emb tile and output tile.
        return 2 * itemsize * (tm * D + D * tn + tm * tn)

    while est(tile_m, tile_n) > vmem_budget and tile_m > 128 and tile_m != M:
        tile_m //= 2
    while est(tile_m, tile_n) > vmem_budget and tile_n > 128 and tile_n != J:
        tile_n //= 2
    return tile_m, tile_n


def abs_pos_emb_1d(q, abs_pos_emb):
    """q: [B, H, I, D] ; abs_pos_emb: [J, D] -> [B, H, I, J]."""
    B, H, I, D = q.shape
    J, D2 = abs_pos_emb.shape
    assert D == D2, "dim_head mismatch between q and abs_pos_emb"

    M = B * H * I
    out_dtype = q.dtype
    itemsize = jnp.dtype(out_dtype).itemsize

    # (M, J) is row-major identical to (B, H, I, J): reshapes are free.
    q_flat = q.reshape(M, D)
    emb_t = abs_pos_emb.astype(out_dtype).T           # (D, J), transposed once

    vmem_budget, vmem_limit = _vmem_budget_and_limit()
    tile_m, tile_n = _choose_tiles(M, J, D, itemsize, vmem_budget)

    grid = (pl.cdiv(M, tile_m), pl.cdiv(J, tile_n))

    cost = pl.CostEstimate(
        flops=2 * M * D * J,
        transcendentals=0,
        bytes_accessed=itemsize * (M * D + D * J + M * J),
    )

    out_flat = pl.pallas_call(
        _abs_pos_emb_kernel,
        out_shape=jax.ShapeDtypeStruct((M, J), out_dtype),
        grid_spec=pltpu.PrefetchScalarGridSpec(
            num_scalar_prefetch=0,
            grid=grid,
            in_specs=[
                # q row tile: block index constant over the inner J axis ->
                # stays VMEM-resident (no re-DMA) across that loop.
                pl.BlockSpec((tile_m, D), lambda m, n: (m, 0)),
                # embedding column tile (the whole embedding when J is small).
                pl.BlockSpec((D, tile_n), lambda m, n: (0, n)),
            ],
            out_specs=pl.BlockSpec((tile_m, tile_n), lambda m, n: (m, n)),
        ),
        compiler_params=pltpu.CompilerParams(
            dimension_semantics=("parallel", "parallel"),  # megacore split
            vmem_limit_bytes=vmem_limit,
        ),
        cost_estimate=cost,
    )(q_flat, emb_t)

    return out_flat.reshape(B, H, I, J)


def init_abs_pos_emb(key, tokens, dim_head, dtype=jnp.float32):
    # Matches nn.Parameter(torch.randn(tokens, dim_head) * dim_head**-0.5)
    scale = dim_head ** (-0.5)
    return jax.random.normal(key, (tokens, dim_head), dtype=dtype) * scale


if __name__ == "__main__":
    key = jax.random.PRNGKey(0)
    k_q, k_emb, k_q2, k_emb2 = jax.random.split(key, 4)

    # Small shapes consistent with the module's forward.
    batch, heads, tokens, dim_head = 2, 4, 8, 32
    q = jax.random.normal(k_q, (batch, heads, tokens, dim_head), dtype=jnp.float32)
    emb = init_abs_pos_emb(k_emb, tokens, dim_head)

    out = jax.block_until_ready(abs_pos_emb_1d(q, emb))
    ref = jnp.einsum("bhid,jd->bhij", q, emb)
    assert out.shape == (batch, heads, tokens, tokens)
    assert jnp.allclose(out, ref, atol=1e-5, rtol=1e-5)

    # Second check: M = 600 is not divisible by the 512-row tile, exercising
    # the partial-last-block path (no wrapper-side padding anywhere).
    b2, h2, t2, d2 = 2, 3, 100, 32
    q2 = jax.random.normal(k_q2, (b2, h2, t2, d2), dtype=jnp.float32)
    emb2 = init_abs_pos_emb(k_emb2, t2, d2)
    out2 = jax.block_until_ready(abs_pos_emb_1d(q2, emb2))
    ref2 = jnp.einsum("bhid,jd->bhij", q2, emb2)
    assert out2.shape == (b2, h2, t2, t2)
    assert jnp.allclose(out2, ref2, atol=1e-4, rtol=1e-4)

    print("KERNEL_OK")
</pallas_src>

<mosaic_0001>
module attributes {stable_mosaic.version = 11 : i64} {
  func.func @_abs_pos_emb_kernel(%arg0: i32, %arg1: i32, %arg2: memref<64x32xf32, #tpu.memory_space<vmem>>, %arg3: memref<32x8xf32, #tpu.memory_space<vmem>>, %arg4: memref<64x8xf32, #tpu.memory_space<vmem>>) attributes {dimension_semantics = [#tpu.dimension_semantics<parallel>, #tpu.dimension_semantics<parallel>], iteration_bounds = array<i64: 1, 1>, scalar_prefetch = 0 : i64, scratch_operands = 0 : i64, tpu.core_type = #tpu.core_type<tc>, window_params = [{transform_indices = @transform_0, window_bounds = array<i64: 64, 32>}, {transform_indices = @transform_1, window_bounds = array<i64: 32, 8>}, {transform_indices = @transform_2, window_bounds = array<i64: 64, 8>}]} {
    %c0 = arith.constant 0 : index
    %c0_0 = arith.constant 0 : index
    %0 = vector.load %arg2[%c0, %c0_0] : memref<64x32xf32, #tpu.memory_space<vmem>>, vector<64x32xf32>
    %c0_1 = arith.constant 0 : index
    %c0_2 = arith.constant 0 : index
    %1 = vector.load %arg3[%c0_1, %c0_2] : memref<32x8xf32, #tpu.memory_space<vmem>>, vector<32x8xf32>
    %cst = arith.constant dense<0.000000e+00> : vector<64x8xf32>
    %2 = tpu.matmul %0, %1, %cst {dimension_numbers = #tpu.dot_dimension_numbers<[1], [0], [0], [1], [0, 0, 1, 1], [], []>} : vector<64x32xf32>, vector<32x8xf32>, vector<64x8xf32> -> vector<64x8xf32>
    %c0_3 = arith.constant 0 : index
    %c0_4 = arith.constant 0 : index
    %3 = vector.load %arg4[%c0_3, %c0_4] : memref<64x8xf32, #tpu.memory_space<vmem>>, vector<64x8xf32>
    tpu.vector_store %arg4[%c0_3, %c0_4], %2 {strides = array<i32>} : memref<64x8xf32, #tpu.memory_space<vmem>>, vector<64x8xf32>,
    return
  }
  func.func @transform_0(%arg0: i32, %arg1: i32) -> (i32, i32) {
    %c0_i32 = arith.constant 0 : i32
    %c0_i32_0 = arith.constant 0 : i32
    return %arg0, %c0_i32 : i32, i32
  }
  func.func @transform_1(%arg0: i32, %arg1: i32) -> (i32, i32) {
    %c0_i32 = arith.constant 0 : i32
    %c0_i32_0 = arith.constant 0 : i32
    return %c0_i32, %arg1 : i32, i32
  }
  func.func @transform_2(%arg0: i32, %arg1: i32) -> (i32, i32) {
    %c0_i32 = arith.constant 0 : i32
    return %arg0, %arg1 : i32, i32
  }
}

</mosaic_0001>

<llo_original>
// kernel: tpu_custom_call.1
$region0: #{tpu_custom_call.1}
  #allocation0 [shape = 'u32[]', space=smem, size = 0x4, offset = 0x4, fixed_abs, tag = 'smem constant byte address 0x4 - core index']
  #allocation1 [shape = 'u32[144,128]{1,0:T(1,128)}', space=vmem, size = 0x12000, scoped, tag = 'internal scratch']
  %s0 = inlined_call_operand.vmem [shape: f32[64,32], index: 0, kind: input, shape index: {}]
  %s1 = inlined_call_operand.vmem [shape: f32[32,8], index: 1, kind: input, shape index: {}]
  %s2 = inlined_call_operand.vmem [shape: f32[64,8], index: 2, kind: output, shape index: {}]
  %s3 = sld [smem:[#allocation0]]
  $region18: #{tpu_custom_call.1} parent=0
    _
  %s5 = ssub.s32 1, %s3
  %s6 = scalar_select 0, %s5, %s3
  // Predicated region
  $region2: #{tpu_custom_call.1} parent=0 // pred_check
    _
  $region3: #{tpu_custom_call.1} parent=0 // pred_check_branch
    %8 = sbr.rel (0) target = $region5
  $region4: #{tpu_custom_call.1} parent=0 // pred_region
    _
  $region5: #{tpu_custom_call.1} parent=0 // pred_fallthru
    _
  // Predicated region
  $region6: #{tpu_custom_call.1} parent=0 // pred_check
    _
  $region7: #{tpu_custom_call.1} parent=0 // pred_check_branch
    %10 = sbr.rel (0) target = $region9
  $region8: #{tpu_custom_call.1} parent=0 // pred_region
    _
  $region9: #{tpu_custom_call.1} parent=0 // pred_fallthru
    _
  %v11 = vld [vmem:[%s0] sm:$0xff]
  %v12 = vld [vmem:[%s0 + $0x8] sm:$0xff]
  %v13 = vld [vmem:[%s0 + $0x10] sm:$0xff]
  %v14 = vld [vmem:[%s0 + $0x18] sm:$0xff]
  %v15 = vld [vmem:[%s0 + $0x20] sm:$0xff]
  %v16 = vld [vmem:[%s0 + $0x28] sm:$0xff]
  %v17 = vld [vmem:[%s0 + $0x30] sm:$0xff]
  %v18 = vld [vmem:[%s0 + $0x38] sm:$0xff]
  %v19 = vld [vmem:[%s1] sm:$0xff]
  %v20 = vld [vmem:[%s1 + $0x8] sm:$0xff]
  %v21 = vld [vmem:[%s1 + $0x10] sm:$0xff]
  %v22 = vld [vmem:[%s1 + $0x18] sm:$0xff]
  %vm23 = vcmask 261120
  %v25 = vsel %vm23, %v11, 0
  %v28 = vsel %vm23, %v12, 0
  %v31 = vsel %vm23, %v13, 0
  %v34 = vsel %vm23, %v14, 0
  %v37 = vsel %vm23, %v15, 0
  %v40 = vsel %vm23, %v16, 0
  %v43 = vsel %vm23, %v17, 0
  %v46 = vsel %vm23, %v18, 0
  %48 = vmatprep.subr.mxu0 0.0
  %49 = vmatpush1.msra.mxu0 %v19
  %50 = vmatprep.subr.mxu0 0.0
  %51 = vmatpush1.msra.mxu0 %v20
  %52 = vmatprep.subr.mxu0 0.0
  %53 = vmatpush1.msra.mxu0 %v21
  %54 = vmatprep.subr.mxu0 0.0
  %55 = vmatpush1.msra.mxu0 %v22
  %56 = vmatprep.subr.mxu0 0.0
  %57 = vmatpush1.msra.mxu0 0.0
  %58 = vmatprep.subr.mxu0 0.0
  %59 = vmatpush1.msra.mxu0 0.0
  %60 = vmatprep.subr.mxu0 0.0
  %61 = vmatpush1.msra.mxu0 0.0
  %62 = vmatprep.subr.mxu0 0.0
  %63 = vmatpush1.msra.mxu0 0.0
  %64 = vmatprep.subr.mxu0 0.0
  %65 = vmatpush1.msra.mxu0 0.0
  %66 = vmatprep.subr.mxu0 0.0
  %67 = vmatpush1.msra.mxu0 0.0
  %68 = vmatprep.subr.mxu0 0.0
  %69 = vmatpush1.msra.mxu0 0.0
  %70 = vmatprep.subr.mxu0 0.0
  %71 = vmatpush1.msra.mxu0 0.0
  %72 = vmatprep.subr.mxu0 0.0
  %73 = vmatpush1.msra.mxu0 0.0
  %74 = vmatprep.subr.mxu0 0.0
  %75 = vmatpush1.msra.mxu0 0.0
  %76 = vmatprep.subr.mxu0 0.0
  %77 = vmatpush1.msra.mxu0 0.0
  %78 = vmatprep.subr.mxu0 0.0
  %79 = vmatpush1.msra.mxu0 0.0
  %80 = vmatprep.subr.mxu0 0.0
  %81 = vmatpush1.msra.mxu0 0.0
  %82 = vmatprep.subr.mxu0 0.0
  %83 = vmatpush1.msra.mxu0 0.0
  %84 = vmatprep.subr.mxu0 0.0
  %85 = vmatpush1.msra.mxu0 0.0
  %86 = vmatprep.subr.mxu0 0.0
  %87 = vmatpush1.msra.mxu0 0.0
  %88 = vmatprep.subr.mxu0 0.0
  %89 = vmatpush1.msra.mxu0 0.0
  %90 = vmatprep.subr.mxu0 0.0
  %91 = vmatpush1.msra.mxu0 0.0
  %92 = vmatprep.subr.mxu0 0.0
  %93 = vmatpush1.msra.mxu0 0.0
  %94 = vmatprep.subr.mxu0 0.0
  %95 = vmatpush1.msra.mxu0 0.0
  %96 = vmatprep.subr.mxu0 0.0
  %97 = vmatpush1.msra.mxu0 0.0
  %98 = vmatprep.subr.mxu0 0.0
  %99 = vmatpush1.msra.mxu0 0.0
  %100 = vmatprep.subr.mxu0 0.0
  %101 = vmatpush1.msra.mxu0 0.0
  %102 = vmatprep.subr.mxu0 0.0
  %103 = vmatpush1.msra.mxu0 0.0
  %104 = vmatprep.subr.mxu0 0.0
  %105 = vmatpush1.msra.mxu0 0.0
  %106 = vmatprep.subr.mxu0 0.0
  %107 = vmatpush1.msra.mxu0 0.0
  %108 = vmatprep.subr.mxu0 0.0
  %109 = vmatpush1.msra.mxu0 0.0
  %110 = vmatprep.subr.mxu0 0.0
  %111 = vmatpush1.msra.mxu0 0.0
  %112 = vmatprep.mubr.f32.mxu0 0.0
  %113 = vmatmul.mubr.f32.gmra.mrb[0].mxu0 %v25
  %v114 = vpop.f32.mrb[0].mxu0
  %v115 = vadd.f32 0.0, %v114
  %v116 = vpop.f32.mrb[0].mxu0
  %117 = vmatprep.mubr.f32.mxu0 0.0
  %118 = vmatmul.mubr.f32.gmra.mrb[0].mxu0 %v28
  %v119 = vpop.f32.mrb[0].mxu0
  %v120 = vadd.f32 0.0, %v119
  %v121 = vpop.f32.mrb[0].mxu0
  %122 = vmatprep.mubr.f32.mxu0 0.0
  %123 = vmatmul.mubr.f32.gmra.mrb[0].mxu0 %v31
  %v124 = vpop.f32.mrb[0].mxu0
  %v125 = vadd.f32 0.0, %v124
  %v126 = vpop.f32.mrb[0].mxu0
  %127 = vmatprep.mubr.f32.mxu0 0.0
  %128 = vmatmul.mubr.f32.gmra.mrb[0].mxu0 %v34
  %v129 = vpop.f32.mrb[0].mxu0
  %v130 = vadd.f32 0.0, %v129
  %v131 = vpop.f32.mrb[0].mxu0
  %132 = vmatprep.mubr.f32.mxu0 0.0
  %133 = vmatmul.mubr.f32.gmra.mrb[0].mxu0 %v37
  %v134 = vpop.f32.mrb[0].mxu0
  %v135 = vadd.f32 0.0, %v134
  %v136 = vpop.f32.mrb[0].mxu0
  %137 = vmatprep.mubr.f32.mxu0 0.0
  %138 = vmatmul.mubr.f32.gmra.mrb[0].mxu0 %v40
  %v139 = vpop.f32.mrb[0].mxu0
  %v140 = vadd.f32 0.0, %v139
  %v141 = vpop.f32.mrb[0].mxu0
  %142 = vmatprep.mubr.f32.mxu0 0.0
  %143 = vmatmul.mubr.f32.gmra.mrb[0].mxu0 %v43
  %v144 = vpop.f32.mrb[0].mxu0
  %v145 = vadd.f32 0.0, %v144
  %v146 = vpop.f32.mrb[0].mxu0
  %147 = vmatprep.mubr.f32.mxu0 0.0
  %148 = vmatmul.mubr.f32.gmra.mrb[0].mxu0 %v46
  %v149 = vpop.f32.mrb[0].mxu0
  %v150 = vadd.f32 0.0, %v149
  %v151 = vpop.f32.mrb[0].mxu0
  %152 = vdwg.mxu0
  %vm153 = vcmask 64512
  %154 = vst.msk [vmem:[%s2] sm:$0xff] %vm153, %v115
  %155 = vst.msk [vmem:[%s2 + $0x8] sm:$0xff] %vm153, %v120
  %156 = vst.msk [vmem:[%s2 + $0x10] sm:$0xff] %vm153, %v125
  %157 = vst.msk [vmem:[%s2 + $0x18] sm:$0xff] %vm153, %v130
  %158 = vst.msk [vmem:[%s2 + $0x20] sm:$0xff] %vm153, %v135
  %159 = vst.msk [vmem:[%s2 + $0x28] sm:$0xff] %vm153, %v140
  %160 = vst.msk [vmem:[%s2 + $0x30] sm:$0xff] %vm153, %v145
  %161 = vst.msk [vmem:[%s2 + $0x38] sm:$0xff] %vm153, %v150
  // Predicated region
  $region10: #{tpu_custom_call.1} parent=0 // pred_check
    _
  $region11: #{tpu_custom_call.1} parent=0 // pred_check_branch
    %163 = sbr.rel (0) target = $region13
  $region12: #{tpu_custom_call.1} parent=0 // pred_region
    _
  $region13: #{tpu_custom_call.1} parent=0 // pred_fallthru
    _
  // Predicated region
  $region14: #{tpu_custom_call.1} parent=0 // pred_check
    _
  $region15: #{tpu_custom_call.1} parent=0 // pred_check_branch
    %165 = sbr.rel (0) target = $region17
  $region16: #{tpu_custom_call.1} parent=0 // pred_region
    _
  $region17: #{tpu_custom_call.1} parent=0 // pred_fallthru
    _

</llo_original>
